<compile_context>
chip_gen: v7x
topology: tpu7x:2x2x1
jax: 0.10.0
libtpu: 0.0.40
codegen_flags: <defaults>
</compile_context>

<pallas_src>
import functools

import jax
import jax.numpy as jnp
from jax.experimental import pallas as pl
from jax.experimental.pallas import tpu as pltpu


def _collision_kernel(x_ref, mask_ref, wflat_ref, bc_ref, w1_ref, b1_ref,
                      w2_ref, b2_ref, w3c_ref, b3_ref, final_ref, pre_ref,
                      stage_ref, *, Wp, Sp, inv_hw, chunk):
    """One grid step: fused 3x3 conv + ReLU + global-avg-pool for Bt whole images,
    then the batched 3-layer head.

    x_ref    : [Bt, C, L]    SAME-padded, flattened images (L = (H+3)*(W+2))
    mask_ref : [1, Sp]       1.0 on the W valid columns of each padded row, else 0.0
    wflat_ref: [Cout, 9*C]   conv taps stacked along K (k = ky*3 + kx)
    bc_ref   : [Cout, 1]     conv bias
    w1_ref   : [F1, Cout], b1_ref [F1, 1]   Linear1 (nn.Linear [out, in] layout)
    w2_ref   : [F2, F1],   b2_ref [F2, 1]   Linear2
    w3c_ref  : [F2, 1],    b3_ref [1, 1]    Linear3 weight as a column
    final_ref: [1, Bt]       sigmoid output (batch on the lane axis)
    pre_ref  : [F1, Bt]      pretrained_output (batch on the lane axis)
    stage_ref: [9*C, chunk]  VMEM staging buffer for the fused-tap matmul operand
    """
    Bt, C, _ = x_ref.shape
    wflat = wflat_ref[...]                            # [Cout, 9C]   (loaded once)
    bc = bc_ref[...]                                  # [Cout, 1]
    cout = bc.shape[0]
    offsets = [ky * Wp + kx for ky in range(3) for kx in range(3)]

    cols = []
    for b in range(Bt):                               # static unroll, Bt is small
        col = jnp.zeros((cout, 1), jnp.float32)
        for p0 in range(0, Sp, chunk):                # static spatial chunking (vreg bound)
            ln = min(chunk, Sp - p0)
            # Stage the 9 shifted taps as one [9C, ln] operand -> single fused matmul.
            for k, off in enumerate(offsets):
                stage_ref[k * C:(k + 1) * C, :ln] = x_ref[b, :, p0 + off:p0 + off + ln]
            conv = jnp.dot(wflat, stage_ref[:, :ln],
                           preferred_element_type=jnp.float32)          # [Cout, ln]
            conv = jnp.maximum(conv + bc, 0.0) * mask_ref[:, p0:p0 + ln]
            col = col + jnp.sum(conv, axis=1, keepdims=True)            # lane reduction
        cols.append(col * inv_hw)                     # [Cout, 1] global average pool

    pooled = jnp.concatenate(cols, axis=1) if Bt > 1 else cols[0]       # [Cout, Bt]

    # Batched head: batch sits on the lane axis -> lane-dense [F1, Bt] / [1, Bt] stores.
    h1 = jnp.maximum(
        jnp.dot(w1_ref[...], pooled, preferred_element_type=jnp.float32) + b1_ref[...],
        0.0)                                          # [F1, Bt]
    pre_ref[...] = h1                                 # pretrained_output
    h2 = jnp.maximum(
        jnp.dot(w2_ref[...], h1, preferred_element_type=jnp.float32) + b2_ref[...],
        0.0)                                          # [F2, Bt]
    logit = jnp.sum(w3c_ref[...] * h2, axis=0, keepdims=True) + b3_ref[...]   # [1, Bt]
    final_ref[...] = jax.nn.sigmoid(logit)            # final_output


def _vmem_limit_bytes():
    """Per-generation VMEM budget (v5e/v6e: 128 MiB phys -> 64 MiB; v7x: 64 -> 32)."""
    cap = 64 * 1024 * 1024
    try:
        info = pltpu.get_tpu_info()
        cap = int(getattr(info, "vmem_capacity_bytes", cap))
    except Exception:
        pass
    return min(cap // 2, 64 * 1024 * 1024)


def collision_classifier_full(x, params, batch_tile=None, chunk=512):
    """x: [B, C, H, W] float32 (NCHW, like PyTorch). Returns (final [B,1], pretrained [B,F1])."""
    B, C, H, W = x.shape
    wc, bc, w1, b1, w2, b2, w3, b3 = params
    Cout, F1, F2 = wc.shape[0], w1.shape[0], w2.shape[0]

    Wp = W + 2                         # padded row width (left/right zero cols folded in)
    Sp = H * Wp                        # pseudo-output pixels per image (pad cols masked)
    L = (H + 3) * Wp                   # SAME pad rows + one trailing zero row as guard

    vmem_limit = _vmem_limit_bytes()
    if batch_tile is None:
        # Whole image per step; pack as many images per step as the double-buffered x
        # slab allows, but keep >= 2 grid steps when B >= 2 (v7x megacore).
        bt_cap = max(1, (vmem_limit // 4) // (C * L * 4))
        batch_tile = min(bt_cap, max(1, -(-B // 2))) if B >= 2 else 1
    Bt = int(batch_tile)
    G = -(-B // Bt)
    B_pad = G * Bt
    chunk_eff = max(1, min(int(chunk), Sp))

    # ---- wrapper glue: ONE pad + reshape of x (no im2col, no per-tile stacking) ----
    xf = x.astype(jnp.float32)
    x_pad = jnp.pad(xf, ((0, B_pad - B), (0, 0), (1, 2), (1, 1)))   # SAME pad + guard row
    x_flat = x_pad.reshape(B_pad, C, L)

    # Pool mask: 1.0 on the W valid columns of each padded row, 0.0 on the 2 pad columns.
    mask = (jnp.arange(Sp, dtype=jnp.int32) % Wp < W).astype(jnp.float32).reshape(1, Sp)

    # Conv weights with the 9 taps stacked along K: wflat[:, k*C + c] = wc[:, c, ky, kx].
    wflat = jnp.transpose(wc, (0, 2, 3, 1)).reshape(Cout, 9 * C)
    bc_c = bc.reshape(Cout, 1)
    b1_c = b1.reshape(F1, 1)
    b2_c = b2.reshape(F2, 1)
    w3_c = w3.reshape(F2, 1)           # nn.Linear weight [1, F2] as a column
    b3_c = b3.reshape(1, 1)

    kern = functools.partial(_collision_kernel, Wp=Wp, Sp=Sp, inv_hw=1.0 / (H * W),
                             chunk=chunk_eff)
    const2 = lambda g: (0, 0)

    final3, pre3 = pl.pallas_call(
        kern,
        out_shape=(
            jax.ShapeDtypeStruct((G, 1, Bt), jnp.float32),     # final_output, batch on lanes
            jax.ShapeDtypeStruct((G, F1, Bt), jnp.float32),    # pretrained_output
        ),
        grid_spec=pltpu.PrefetchScalarGridSpec(
            num_scalar_prefetch=0,
            grid=(G,),                                         # batch tiles only (T = 1)
            in_specs=[
                pl.BlockSpec((Bt, C, L), lambda g: (g, 0, 0)),
                pl.BlockSpec((1, Sp), const2),
                pl.BlockSpec((Cout, 9 * C), const2),
                pl.BlockSpec((Cout, 1), const2),
                pl.BlockSpec((F1, Cout), const2),
                pl.BlockSpec((F1, 1), const2),
                pl.BlockSpec((F2, F1), const2),
                pl.BlockSpec((F2, 1), const2),
                pl.BlockSpec((F2, 1), const2),
                pl.BlockSpec((1, 1), const2),
            ],
            out_specs=(
                pl.BlockSpec((None, 1, Bt), lambda g: (g, 0, 0)),
                pl.BlockSpec((None, F1, Bt), lambda g: (g, 0, 0)),
            ),
            scratch_shapes=[pltpu.VMEM((9 * C, chunk_eff), jnp.float32)],
        ),
        compiler_params=pltpu.CompilerParams(
            dimension_semantics=("parallel",),
            vmem_limit_bytes=vmem_limit,
        ),
    )(x_flat, mask, wflat, bc_c, w1, b1_c, w2, b2_c, w3_c, b3_c)

    final = jnp.transpose(final3, (0, 2, 1)).reshape(B_pad, 1)[:B]
    pre = jnp.transpose(pre3, (0, 2, 1)).reshape(B_pad, F1)[:B]
    return final, pre


def init_params(key, cin=4, cout=8, f1=32, f2=16):
    ks = jax.random.split(key, 8)
    scale = 0.1
    wc = scale * jax.random.normal(ks[0], (cout, cin, 3, 3), jnp.float32)
    bc = scale * jax.random.normal(ks[1], (cout,), jnp.float32)
    w1 = scale * jax.random.normal(ks[2], (f1, cout), jnp.float32)
    b1 = scale * jax.random.normal(ks[3], (f1,), jnp.float32)
    w2 = scale * jax.random.normal(ks[4], (f2, f1), jnp.float32)
    b2 = scale * jax.random.normal(ks[5], (f2,), jnp.float32)
    w3 = scale * jax.random.normal(ks[6], (1, f2), jnp.float32)
    b3 = scale * jax.random.normal(ks[7], (1,), jnp.float32)
    return (wc, bc, w1, b1, w2, b2, w3, b3)


def _reference_forward(x, params):
    """Pure-JAX reference (same math, XLA conv) for a correctness sanity check."""
    wc, bc, w1, b1, w2, b2, w3, b3 = params
    prec = jax.lax.Precision.HIGHEST
    conv = jax.lax.conv_general_dilated(
        x.astype(jnp.float32), wc.astype(jnp.float32),
        window_strides=(1, 1), padding="SAME",
        dimension_numbers=("NCHW", "OIHW", "NCHW"), precision=prec)
    conv = jnp.maximum(conv + bc.reshape(1, -1, 1, 1), 0.0)
    pooled = conv.mean(axis=(2, 3))
    h1 = jnp.maximum(jnp.dot(pooled, w1.T, precision=prec) + b1, 0.0)
    h2 = jnp.maximum(jnp.dot(h1, w2.T, precision=prec) + b2, 0.0)
    final = jax.nn.sigmoid(jnp.dot(h2, w3.T, precision=prec) + b3)
    return final, h1


if __name__ == "__main__":
    key = jax.random.PRNGKey(0)
    k_x, k_p = jax.random.split(key)
    B, C, H, W = 2, 4, 16, 16
    x = jax.random.normal(k_x, (B, C, H, W), jnp.float32)        # NCHW, like PyTorch
    params = init_params(k_p, cin=C)

    fwd = jax.jit(lambda xx: collision_classifier_full(xx, params))
    final_out, pre_out = fwd(x)
    jax.block_until_ready((final_out, pre_out))

    assert final_out.shape == (B, 1)
    assert pre_out.shape == (B, 32)
    assert bool(jnp.all(jnp.isfinite(final_out)))
    assert bool(jnp.all(jnp.isfinite(pre_out)))

    ref_final, ref_pre = _reference_forward(x, params)
    assert bool(jnp.allclose(final_out, ref_final, atol=2e-3, rtol=2e-3)), "final mismatch"
    assert bool(jnp.allclose(pre_out, ref_pre, atol=2e-3, rtol=2e-3)), "pretrained mismatch"

    print("KERNEL_OK")
</pallas_src>

<mosaic_0001>
module attributes {stable_mosaic.version = 11 : i64} {
  func.func @_collision_kernel(%arg0: i32, %arg1: memref<1x4x342xf32, #tpu.memory_space<vmem>>, %arg2: memref<1x288xf32, #tpu.memory_space<vmem>>, %arg3: memref<8x36xf32, #tpu.memory_space<vmem>>, %arg4: memref<8x1xf32, #tpu.memory_space<vmem>>, %arg5: memref<32x8xf32, #tpu.memory_space<vmem>>, %arg6: memref<32x1xf32, #tpu.memory_space<vmem>>, %arg7: memref<16x32xf32, #tpu.memory_space<vmem>>, %arg8: memref<16x1xf32, #tpu.memory_space<vmem>>, %arg9: memref<16x1xf32, #tpu.memory_space<vmem>>, %arg10: memref<1x1xf32, #tpu.memory_space<vmem>>, %arg11: memref<1x1x1xf32, #tpu.memory_space<vmem>>, %arg12: memref<1x32x1xf32, #tpu.memory_space<vmem>>, %arg13: memref<36x288xf32, #tpu.memory_space<vmem>>) attributes {dimension_semantics = [#tpu.dimension_semantics<parallel>], iteration_bounds = array<i64: 2>, scalar_prefetch = 0 : i64, scratch_operands = 1 : i64, tpu.core_type = #tpu.core_type<tc>, window_params = [{transform_indices = @transform_0, window_bounds = array<i64: 1, 4, 342>}, {pipeline_mode = #tpu.pipeline_mode<synchronous>, transform_indices = @transform_1, window_bounds = array<i64: 1, 288>}, {pipeline_mode = #tpu.pipeline_mode<synchronous>, transform_indices = @transform_2, window_bounds = array<i64: 8, 36>}, {pipeline_mode = #tpu.pipeline_mode<synchronous>, transform_indices = @transform_3, window_bounds = array<i64: 8, 1>}, {pipeline_mode = #tpu.pipeline_mode<synchronous>, transform_indices = @transform_4, window_bounds = array<i64: 32, 8>}, {pipeline_mode = #tpu.pipeline_mode<synchronous>, transform_indices = @transform_5, window_bounds = array<i64: 32, 1>}, {pipeline_mode = #tpu.pipeline_mode<synchronous>, transform_indices = @transform_6, window_bounds = array<i64: 16, 32>}, {pipeline_mode = #tpu.pipeline_mode<synchronous>, transform_indices = @transform_7, window_bounds = array<i64: 16, 1>}, {pipeline_mode = #tpu.pipeline_mode<synchronous>, transform_indices = @transform_8, window_bounds = array<i64: 16, 1>}, {pipeline_mode = #tpu.pipeline_mode<synchronous>, transform_indices = @transform_9, window_bounds = array<i64: 1, 1>}, {transform_indices = @transform_10, window_bounds = array<i64: 1, 1, 1>}, {transform_indices = @transform_11, window_bounds = array<i64: 1, 32, 1>}]} {
    %c0 = arith.constant 0 : index
    %c0_0 = arith.constant 0 : index
    %0 = vector.load %arg3[%c0, %c0_0] : memref<8x36xf32, #tpu.memory_space<vmem>>, vector<8x36xf32>
    %c0_1 = arith.constant 0 : index
    %c0_2 = arith.constant 0 : index
    %1 = vector.load %arg4[%c0_1, %c0_2] : memref<8x1xf32, #tpu.memory_space<vmem>>, vector<8x1xf32>
    %cst = arith.constant 0.000000e+00 : f32
    %2 = vector.broadcast %cst : f32 to vector<8x1xf32>
    %c0_3 = arith.constant 0 : index
    %c0_4 = arith.constant 0 : index
    %c0_5 = arith.constant 0 : index
    %3 = vector.load %arg1[%c0_3, %c0_4, %c0_5] : memref<1x4x342xf32, #tpu.memory_space<vmem>>, vector<1x4x288xf32>
    %4 = vector.shape_cast %3 : vector<1x4x288xf32> to vector<4x288xf32>
    %c0_6 = arith.constant 0 : index
    %c0_7 = arith.constant 0 : index
    %5 = vector.load %arg13[%c0_6, %c0_7] : memref<36x288xf32, #tpu.memory_space<vmem>>, vector<4x288xf32>
    tpu.vector_store %arg13[%c0_6, %c0_7], %4 {strides = array<i32>} : memref<36x288xf32, #tpu.memory_space<vmem>>, vector<4x288xf32>,
    %c0_8 = arith.constant 0 : index
    %c0_9 = arith.constant 0 : index
    %c1 = arith.constant 1 : index
    %6 = vector.load %arg1[%c0_8, %c0_9, %c1] : memref<1x4x342xf32, #tpu.memory_space<vmem>>, vector<1x4x288xf32>
    %7 = vector.shape_cast %6 : vector<1x4x288xf32> to vector<4x288xf32>
    %c4 = arith.constant 4 : index
    %c0_10 = arith.constant 0 : index
    %8 = vector.load %arg13[%c4, %c0_10] : memref<36x288xf32, #tpu.memory_space<vmem>>, vector<4x288xf32>
    tpu.vector_store %arg13[%c4, %c0_10], %7 {strides = array<i32>} : memref<36x288xf32, #tpu.memory_space<vmem>>, vector<4x288xf32>,
    %c0_11 = arith.constant 0 : index
    %c0_12 = arith.constant 0 : index
    %c2 = arith.constant 2 : index
    %9 = vector.load %arg1[%c0_11, %c0_12, %c2] : memref<1x4x342xf32, #tpu.memory_space<vmem>>, vector<1x4x288xf32>
    %10 = vector.shape_cast %9 : vector<1x4x288xf32> to vector<4x288xf32>
    %c8 = arith.constant 8 : index
    %c0_13 = arith.constant 0 : index
    %11 = vector.load %arg13[%c8, %c0_13] : memref<36x288xf32, #tpu.memory_space<vmem>>, vector<4x288xf32>
    tpu.vector_store %arg13[%c8, %c0_13], %10 {strides = array<i32>} : memref<36x288xf32, #tpu.memory_space<vmem>>, vector<4x288xf32>,
    %c0_14 = arith.constant 0 : index
    %c0_15 = arith.constant 0 : index
    %c18 = arith.constant 18 : index
    %12 = vector.load %arg1[%c0_14, %c0_15, %c18] : memref<1x4x342xf32, #tpu.memory_space<vmem>>, vector<1x4x288xf32>
    %13 = vector.shape_cast %12 : vector<1x4x288xf32> to vector<4x288xf32>
    %c12 = arith.constant 12 : index
    %c0_16 = arith.constant 0 : index
    %14 = vector.load %arg13[%c12, %c0_16] : memref<36x288xf32, #tpu.memory_space<vmem>>, vector<4x288xf32>
    tpu.vector_store %arg13[%c12, %c0_16], %13 {strides = array<i32>} : memref<36x288xf32, #tpu.memory_space<vmem>>, vector<4x288xf32>,
    %c0_17 = arith.constant 0 : index
    %c0_18 = arith.constant 0 : index
    %c19 = arith.constant 19 : index
    %15 = vector.load %arg1[%c0_17, %c0_18, %c19] : memref<1x4x342xf32, #tpu.memory_space<vmem>>, vector<1x4x288xf32>
    %16 = vector.shape_cast %15 : vector<1x4x288xf32> to vector<4x288xf32>
    %c16 = arith.constant 16 : index
    %c0_19 = arith.constant 0 : index
    %17 = vector.load %arg13[%c16, %c0_19] : memref<36x288xf32, #tpu.memory_space<vmem>>, vector<4x288xf32>
    tpu.vector_store %arg13[%c16, %c0_19], %16 {strides = array<i32>} : memref<36x288xf32, #tpu.memory_space<vmem>>, vector<4x288xf32>,
    %c0_20 = arith.constant 0 : index
    %c0_21 = arith.constant 0 : index
    %c20 = arith.constant 20 : index
    %18 = vector.load %arg1[%c0_20, %c0_21, %c20] : memref<1x4x342xf32, #tpu.memory_space<vmem>>, vector<1x4x288xf32>
    %19 = vector.shape_cast %18 : vector<1x4x288xf32> to vector<4x288xf32>
    %c20_22 = arith.constant 20 : index
    %c0_23 = arith.constant 0 : index
    %20 = vector.load %arg13[%c20_22, %c0_23] : memref<36x288xf32, #tpu.memory_space<vmem>>, vector<4x288xf32>
    tpu.vector_store %arg13[%c20_22, %c0_23], %19 {strides = array<i32>} : memref<36x288xf32, #tpu.memory_space<vmem>>, vector<4x288xf32>,
    %c0_24 = arith.constant 0 : index
    %c0_25 = arith.constant 0 : index
    %c36 = arith.constant 36 : index
    %21 = vector.load %arg1[%c0_24, %c0_25, %c36] : memref<1x4x342xf32, #tpu.memory_space<vmem>>, vector<1x4x288xf32>
    %22 = vector.shape_cast %21 : vector<1x4x288xf32> to vector<4x288xf32>
    %c24 = arith.constant 24 : index
    %c0_26 = arith.constant 0 : index
    %23 = vector.load %arg13[%c24, %c0_26] : memref<36x288xf32, #tpu.memory_space<vmem>>, vector<4x288xf32>
    tpu.vector_store %arg13[%c24, %c0_26], %22 {strides = array<i32>} : memref<36x288xf32, #tpu.memory_space<vmem>>, vector<4x288xf32>,
    %c0_27 = arith.constant 0 : index
    %c0_28 = arith.constant 0 : index
    %c37 = arith.constant 37 : index
    %24 = vector.load %arg1[%c0_27, %c0_28, %c37] : memref<1x4x342xf32, #tpu.memory_space<vmem>>, vector<1x4x288xf32>
    %25 = vector.shape_cast %24 : vector<1x4x288xf32> to vector<4x288xf32>
    %c28 = arith.constant 28 : index
    %c0_29 = arith.constant 0 : index
    %26 = vector.load %arg13[%c28, %c0_29] : memref<36x288xf32, #tpu.memory_space<vmem>>, vector<4x288xf32>
    tpu.vector_store %arg13[%c28, %c0_29], %25 {strides = array<i32>} : memref<36x288xf32, #tpu.memory_space<vmem>>, vector<4x288xf32>,
    %c0_30 = arith.constant 0 : index
    %c0_31 = arith.constant 0 : index
    %c38 = arith.constant 38 : index
    %27 = vector.load %arg1[%c0_30, %c0_31, %c38] : memref<1x4x342xf32, #tpu.memory_space<vmem>>, vector<1x4x288xf32>
    %28 = vector.shape_cast %27 : vector<1x4x288xf32> to vector<4x288xf32>
    %c32 = arith.constant 32 : index
    %c0_32 = arith.constant 0 : index
    %29 = vector.load %arg13[%c32, %c0_32] : memref<36x288xf32, #tpu.memory_space<vmem>>, vector<4x288xf32>
    tpu.vector_store %arg13[%c32, %c0_32], %28 {strides = array<i32>} : memref<36x288xf32, #tpu.memory_space<vmem>>, vector<4x288xf32>,
    %c0_33 = arith.constant 0 : index
    %c0_34 = arith.constant 0 : index
    %30 = vector.load %arg13[%c0_33, %c0_34] : memref<36x288xf32, #tpu.memory_space<vmem>>, vector<36x288xf32>
    %cst_35 = arith.constant dense<0.000000e+00> : vector<8x288xf32>
    %31 = tpu.matmul %0, %30, %cst_35 {dimension_numbers = #tpu.dot_dimension_numbers<[1], [0], [0], [1], [0, 0, 1, 1], [], []>} : vector<8x36xf32>, vector<36x288xf32>, vector<8x288xf32> -> vector<8x288xf32>
    %32 = vector.broadcast %1 : vector<8x1xf32> to vector<8x288xf32>
    %33 = arith.addf %31, %32 : vector<8x288xf32>
    %cst_36 = arith.constant 0.000000e+00 : f32
    %34 = vector.broadcast %cst_36 : f32 to vector<8x288xf32>
    %35 = arith.maximumf %33, %34 : vector<8x288xf32>
    %c0_37 = arith.constant 0 : index
    %c0_38 = arith.constant 0 : index
    %36 = vector.load %arg2[%c0_37, %c0_38] : memref<1x288xf32, #tpu.memory_space<vmem>>, vector<1x288xf32>
    %37 = vector.broadcast %36 : vector<1x288xf32> to vector<8x288xf32>
    %38 = arith.mulf %35, %37 : vector<8x288xf32>
    %cst_39 = arith.constant dense<0.000000e+00> : vector<8xf32>
    %39 = vector.multi_reduction <add>, %38, %cst_39 [1] : vector<8x288xf32> to vector<8xf32>
    %40 = vector.shape_cast %39 : vector<8xf32> to vector<8x1xf32>
    %41 = arith.addf %2, %40 : vector<8x1xf32>
    %cst_40 = arith.constant 3.906250e-03 : f32
    %42 = vector.broadcast %cst_40 : f32 to vector<8x1xf32>
    %43 = arith.mulf %41, %42 : vector<8x1xf32>
    %c0_41 = arith.constant 0 : index
    %c0_42 = arith.constant 0 : index
    %44 = vector.load %arg5[%c0_41, %c0_42] : memref<32x8xf32, #tpu.memory_space<vmem>>, vector<32x8xf32>
    %cst_43 = arith.constant dense<0.000000e+00> : vector<32x1xf32>
    %45 = tpu.matmul %44, %43, %cst_43 {dimension_numbers = #tpu.dot_dimension_numbers<[1], [0], [0], [1], [0, 0, 1, 1], [], []>} : vector<32x8xf32>, vector<8x1xf32>, vector<32x1xf32> -> vector<32x1xf32>
    %c0_44 = arith.constant 0 : index
    %c0_45 = arith.constant 0 : index
    %46 = vector.load %arg6[%c0_44, %c0_45] : memref<32x1xf32, #tpu.memory_space<vmem>>, vector<32x1xf32>
    %47 = arith.addf %45, %46 : vector<32x1xf32>
    %cst_46 = arith.constant 0.000000e+00 : f32
    %48 = vector.broadcast %cst_46 : f32 to vector<32x1xf32>
    %49 = arith.maximumf %47, %48 : vector<32x1xf32>
    %c0_47 = arith.constant 0 : index
    %c0_48 = arith.constant 0 : index
    %c0_49 = arith.constant 0 : index
    %50 = vector.load %arg12[%c0_47, %c0_48, %c0_49] : memref<1x32x1xf32, #tpu.memory_space<vmem>>, vector<1x32x1xf32>
    %51 = vector.shape_cast %50 : vector<1x32x1xf32> to vector<32x1xf32>
    %52 = vector.shape_cast %49 : vector<32x1xf32> to vector<1x32x1xf32>
    tpu.vector_store %arg12[%c0_47, %c0_48, %c0_49], %52 {strides = array<i32>} : memref<1x32x1xf32, #tpu.memory_space<vmem>>, vector<1x32x1xf32>,
    %c0_50 = arith.constant 0 : index
    %c0_51 = arith.constant 0 : index
    %53 = vector.load %arg7[%c0_50, %c0_51] : memref<16x32xf32, #tpu.memory_space<vmem>>, vector<16x32xf32>
    %cst_52 = arith.constant dense<0.000000e+00> : vector<16x1xf32>
    %54 = tpu.matmul %53, %49, %cst_52 {dimension_numbers = #tpu.dot_dimension_numbers<[1], [0], [0], [1], [0, 0, 1, 1], [], []>} : vector<16x32xf32>, vector<32x1xf32>, vector<16x1xf32> -> vector<16x1xf32>
    %c0_53 = arith.constant 0 : index
    %c0_54 = arith.constant 0 : index
    %55 = vector.load %arg8[%c0_53, %c0_54] : memref<16x1xf32, #tpu.memory_space<vmem>>, vector<16x1xf32>
    %56 = arith.addf %54, %55 : vector<16x1xf32>
    %cst_55 = arith.constant 0.000000e+00 : f32
    %57 = vector.broadcast %cst_55 : f32 to vector<16x1xf32>
    %58 = arith.maximumf %56, %57 : vector<16x1xf32>
    %c0_56 = arith.constant 0 : index
    %c0_57 = arith.constant 0 : index
    %59 = vector.load %arg9[%c0_56, %c0_57] : memref<16x1xf32, #tpu.memory_space<vmem>>, vector<16x1xf32>
    %60 = arith.mulf %59, %58 : vector<16x1xf32>
    %cst_58 = arith.constant dense<0.000000e+00> : vector<1xf32>
    %61 = vector.multi_reduction <add>, %60, %cst_58 [0] : vector<16x1xf32> to vector<1xf32>
    %62 = vector.shape_cast %61 : vector<1xf32> to vector<1x1xf32>
    %c0_59 = arith.constant 0 : index
    %c0_60 = arith.constant 0 : index
    %63 = vector.load %arg10[%c0_59, %c0_60] : memref<1x1xf32, #tpu.memory_space<vmem>>, vector<1x1xf32>
    %64 = arith.addf %62, %63 : vector<1x1xf32>
    %65 = arith.negf %64 : vector<1x1xf32>
    %66 = math.exp %65 : vector<1x1xf32>
    %cst_61 = arith.constant 1.000000e+00 : f32
    %67 = vector.broadcast %cst_61 : f32 to vector<1x1xf32>
    %68 = arith.addf %67, %66 : vector<1x1xf32>
    %69 = arith.divf %67, %68 : vector<1x1xf32>
    %c0_62 = arith.constant 0 : index
    %c0_63 = arith.constant 0 : index
    %c0_64 = arith.constant 0 : index
    %70 = vector.load %arg11[%c0_62, %c0_63, %c0_64] : memref<1x1x1xf32, #tpu.memory_space<vmem>>, vector<1x1x1xf32>
    %71 = vector.shape_cast %70 : vector<1x1x1xf32> to vector<1x1xf32>
    %72 = vector.shape_cast %69 : vector<1x1xf32> to vector<1x1x1xf32>
    tpu.vector_store %arg11[%c0_62, %c0_63, %c0_64], %72 {strides = array<i32>} : memref<1x1x1xf32, #tpu.memory_space<vmem>>, vector<1x1x1xf32>,
    return
  }
  func.func @transform_0(%arg0: i32) -> (i32, i32, i32) {
    %c0_i32 = arith.constant 0 : i32
    %c0_i32_0 = arith.constant 0 : i32
    %c0_i32_1 = arith.constant 0 : i32
    return %arg0, %c0_i32, %c0_i32_0 : i32, i32, i32
  }
  func.func @transform_1(%arg0: i32) -> (i32, i32) {
    %c0_i32 = arith.constant 0 : i32
    %c0_i32_0 = arith.constant 0 : i32
    %c0_i32_1 = arith.constant 0 : i32
    return %c0_i32, %c0_i32_0 : i32, i32
  }
  func.func @transform_2(%arg0: i32) -> (i32, i32) {
    %c0_i32 = arith.constant 0 : i32
    %c0_i32_0 = arith.constant 0 : i32
    %c0_i32_1 = arith.constant 0 : i32
    return %c0_i32, %c0_i32_0 : i32, i32
  }
  func.func @transform_3(%arg0: i32) -> (i32, i32) {
    %c0_i32 = arith.constant 0 : i32
    %c0_i32_0 = arith.constant 0 : i32
    %c0_i32_1 = arith.constant 0 : i32
    return %c0_i32, %c0_i32_0 : i32, i32
  }
  func.func @transform_4(%arg0: i32) -> (i32, i32) {
    %c0_i32 = arith.constant 0 : i32
    %c0_i32_0 = arith.constant 0 : i32
    %c0_i32_1 = arith.constant 0 : i32
    return %c0_i32, %c0_i32_0 : i32, i32
  }
  func.func @transform_5(%arg0: i32) -> (i32, i32) {
    %c0_i32 = arith.constant 0 : i32
    %c0_i32_0 = arith.constant 0 : i32
    %c0_i32_1 = arith.constant 0 : i32
    return %c0_i32, %c0_i32_0 : i32, i32
  }
  func.func @transform_6(%arg0: i32) -> (i32, i32) {
    %c0_i32 = arith.constant 0 : i32
    %c0_i32_0 = arith.constant 0 : i32
    %c0_i32_1 = arith.constant 0 : i32
    return %c0_i32, %c0_i32_0 : i32, i32
  }
  func.func @transform_7(%arg0: i32) -> (i32, i32) {
    %c0_i32 = arith.constant 0 : i32
    %c0_i32_0 = arith.constant 0 : i32
    %c0_i32_1 = arith.constant 0 : i32
    return %c0_i32, %c0_i32_0 : i32, i32
  }
  func.func @transform_8(%arg0: i32) -> (i32, i32) {
    %c0_i32 = arith.constant 0 : i32
    %c0_i32_0 = arith.constant 0 : i32
    %c0_i32_1 = arith.constant 0 : i32
    return %c0_i32, %c0_i32_0 : i32, i32
  }
  func.func @transform_9(%arg0: i32) -> (i32, i32) {
    %c0_i32 = arith.constant 0 : i32
    %c0_i32_0 = arith.constant 0 : i32
    %c0_i32_1 = arith.constant 0 : i32
    return %c0_i32, %c0_i32_0 : i32, i32
  }
  func.func @transform_10(%arg0: i32) -> (i32, i32, i32) {
    %c0_i32 = arith.constant 0 : i32
    %c0_i32_0 = arith.constant 0 : i32
    %c0_i32_1 = arith.constant 0 : i32
    return %arg0, %c0_i32, %c0_i32_0 : i32, i32, i32
  }
  func.func @transform_11(%arg0: i32) -> (i32, i32, i32) {
    %c0_i32 = arith.constant 0 : i32
    %c0_i32_0 = arith.constant 0 : i32
    %c0_i32_1 = arith.constant 0 : i32
    return %arg0, %c0_i32, %c0_i32_0 : i32, i32, i32
  }
}

</mosaic_0001>

<llo_original>
// kernel: _lambda_.1
$region0: #{_lambda_.1}
  #allocation0 [shape = 'u32[]', space=smem, size = 0x4, offset = 0x4, fixed_abs, tag = 'smem constant byte address 0x4 - core index']
  #allocation1 [shape = 'u32[144,128]{1,0:T(1,128)}', space=vmem, size = 0x12000, scoped, tag = 'internal scratch']
  #allocation2 [shape = 'f32[36,288]{1,0:T(8,128)}', space=vmem, size = 0xf000, scoped, tag = 'scratch operand']
  #allocation3 [shape = 'f32[1,1]{1,0:T(1,128)S(1)}', space=vmem, size = 0x200, scoped, tag = 'scoped memory for _lambda_.1']
  %s0 = inlined_call_operand.vmem [shape: f32[2,4,342], index: 0, kind: input, shape index: {}]
  %s1 = inlined_call_operand.vmem [shape: f32[1,288], index: 1, kind: input, shape index: {}]
  %s2 = inlined_call_operand.vmem [shape: f32[8,36], index: 2, kind: input, shape index: {}]
  %s3 = inlined_call_operand.vmem [shape: f32[8,1], index: 3, kind: input, shape index: {}]
  %s4 = inlined_call_operand.vmem [shape: f32[32,8], index: 4, kind: input, shape index: {}]
  %s5 = inlined_call_operand.vmem [shape: f32[32,1], index: 5, kind: input, shape index: {}]
  %s6 = inlined_call_operand.vmem [shape: f32[16,32], index: 6, kind: input, shape index: {}]
  %s7 = inlined_call_operand.vmem [shape: f32[16,1], index: 7, kind: input, shape index: {}]
  %s8 = inlined_call_operand.vmem [shape: f32[16,1], index: 8, kind: input, shape index: {}]
  %s9 = inlined_call_operand.<no memory space> [shape: f32[1,1], index: 9, kind: input, shape index: {}]
  %s10 = inlined_call_operand.vmem [shape: f32[2,1,1], index: 10, kind: output, shape index: {0}]
  %s11 = inlined_call_operand.vmem [shape: f32[2,32,1], index: 11, kind: output, shape index: {1}]
  %12 = xla_tuple %s10, %s11
  %s13 = sld [smem:[#allocation0]]
  $region81: #{_lambda_.1} parent=0
    _
  %s15 = ssub.s32 1, %s13
  %s16 = scalar_select 0, %s15, %s13
  %v17 = vstv %s9
  %18 = vst [vmem:[#allocation3] sm:$0x1] %v17
  loop: start=0, step=1, limit=4
  $region2: #{_lambda_.1} parent=0 // loop_pre_header
    _
  $region3: #{_lambda_.1} parent=0 // loop_header
    %s20 = sphi 0, %s24
    %p21 = scmp.ge.s32.totalorder %s20, 4
    %s30 = sphi 0, %s32
    %s33 = sphi 0, %s30
    %s34 = sphi 0, %s33
    %s50 = sphi 0, %s34
    %s54 = sphi 0, %s54
    %s56 = sphi 0, %s54
    %s57 = sphi 0, %s56
    %s71 = sphi 0, %s57
    %s75 = sphi 0, %s75
    %s77 = sphi 0, %s75
    %s78 = sphi 0, %s77
    %s92 = sphi 0, %s78
    %s96 = sphi 0, %s96
    %s98 = sphi 0, %s96
    %s99 = sphi 0, %s98
    %s113 = sphi 0, %s99
    %s117 = sphi 0, %s117
    %s119 = sphi 0, %s117
    %s120 = sphi 0, %s119
    %s134 = sphi 0, %s120
    %s138 = sphi 0, %s138
    %s140 = sphi 0, %s138
    %s141 = sphi 0, %s140
    %s155 = sphi 0, %s141
    %s159 = sphi 0, %s159
    %s161 = sphi 0, %s159
    %s162 = sphi 0, %s161
    %s176 = sphi 0, %s162
    %s180 = sphi 0, %s180
    %s182 = sphi 0, %s180
    %s183 = sphi 0, %s182
    %s197 = sphi 0, %s183
    %s201 = sphi 0, %s201
    %s203 = sphi 0, %s201
    %s204 = sphi 0, %s203
    %s218 = sphi 0, %s204
    %s222 = sphi 0, %s222
    %s224 = sphi 0, %s222
    %s225 = sphi 0, %s224
    %s239 = sphi 0, %s225
    %s245 = sphi 0, %s247
    %s248 = sphi 0, %s245
    %s249 = sphi 0, %s248
    %s265 = sphi 0, %s249
    %s271 = sphi 0, %s273
    %s274 = sphi 0, %s271
    %s275 = sphi 0, %s274
    %s291 = sphi 0, %s275
  $region4: #{_lambda_.1} parent=0 // loop_header_branch
    %23 = sbr.rel (%p21) target = $region8
  $region5: #{_lambda_.1} parent=0 // loop_body
    %s25 = ssub.s32 %s20, 1
    %s26 = ssub.s32 %s20, 2
    %s27 = sadd.s32 %s20, 1
    %s28 = ssub.s32 %s20, %s27
    %p29 = scmp.eq.s32.totalorder %s28, 0
    %s31 = sadd.s32 %s30, 1
    %s32 = scalar_select %p29, %s30, %s31
    %p35 = pneg %p29
    %p36 = scmp.eq.s32.totalorder %s20, 1
    %p37 = por %p35, %p36
    %p38 = scmp.ne.s32.totalorder %s30, %s33
    %p39 = scmp.eq.s32.totalorder %s20, 0
    %p40 = por %p38, %p39
    %p41 = scmp.ne.s32.totalorder %s30, %s33
    %p42 = scmp.eq.s32.totalorder %s25, 1
    %p43 = por %p41, %p42
    %p44 = scmp.ne.s32.totalorder %s33, %s34
    %p45 = scmp.eq.s32.totalorder %s25, 0
    %p46 = por %p44, %p45
    %p47 = scmp.ne.s32.totalorder %s33, %s34
    %p48 = scmp.eq.s32.totalorder %s26, 1
    %p49 = por %p47, %p48
    %p51 = scmp.ne.s32.totalorder %s34, %s50
    %p52 = scmp.eq.s32.totalorder %s26, 0
    %p53 = por %p51, %p52
    %s55 = sadd.s32 %s54, 1
    %p58 = scmp.eq.s32.totalorder %s20, 1
    %p59 = scmp.ne.s32.totalorder %s54, %s56
    %p60 = scmp.eq.s32.totalorder %s20, 0
    %p61 = por %p59, %p60
    %p62 = scmp.ne.s32.totalorder %s54, %s56
    %p63 = scmp.eq.s32.totalorder %s25, 1
    %p64 = por %p62, %p63
    %p65 = scmp.ne.s32.totalorder %s56, %s57
    %p66 = scmp.eq.s32.totalorder %s25, 0
    %p67 = por %p65, %p66
    %p68 = scmp.ne.s32.totalorder %s56, %s57
    %p69 = scmp.eq.s32.totalorder %s26, 1
    %p70 = por %p68, %p69
    %p72 = scmp.ne.s32.totalorder %s57, %s71
    %p73 = scmp.eq.s32.totalorder %s26, 0
    %p74 = por %p72, %p73
    %s76 = sadd.s32 %s75, 1
    %p79 = scmp.eq.s32.totalorder %s20, 1
    %p80 = scmp.ne.s32.totalorder %s75, %s77
    %p81 = scmp.eq.s32.totalorder %s20, 0
    %p82 = por %p80, %p81
    %p83 = scmp.ne.s32.totalorder %s75, %s77
    %p84 = scmp.eq.s32.totalorder %s25, 1
    %p85 = por %p83, %p84
    %p86 = scmp.ne.s32.totalorder %s77, %s78
    %p87 = scmp.eq.s32.totalorder %s25, 0
    %p88 = por %p86, %p87
    %p89 = scmp.ne.s32.totalorder %s77, %s78
    %p90 = scmp.eq.s32.totalorder %s26, 1
    %p91 = por %p89, %p90
    %p93 = scmp.ne.s32.totalorder %s78, %s92
    %p94 = scmp.eq.s32.totalorder %s26, 0
    %p95 = por %p93, %p94
    %s97 = sadd.s32 %s96, 1
    %p100 = scmp.eq.s32.totalorder %s20, 1
    %p101 = scmp.ne.s32.totalorder %s96, %s98
    %p102 = scmp.eq.s32.totalorder %s20, 0
    %p103 = por %p101, %p102
    %p104 = scmp.ne.s32.totalorder %s96, %s98
    %p105 = scmp.eq.s32.totalorder %s25, 1
    %p106 = por %p104, %p105
    %p107 = scmp.ne.s32.totalorder %s98, %s99
    %p108 = scmp.eq.s32.totalorder %s25, 0
    %p109 = por %p107, %p108
    %p110 = scmp.ne.s32.totalorder %s98, %s99
    %p111 = scmp.eq.s32.totalorder %s26, 1
    %p112 = por %p110, %p111
    %p114 = scmp.ne.s32.totalorder %s99, %s113
    %p115 = scmp.eq.s32.totalorder %s26, 0
    %p116 = por %p114, %p115
    %s118 = sadd.s32 %s117, 1
    %p121 = scmp.eq.s32.totalorder %s20, 1
    %p122 = scmp.ne.s32.totalorder %s117, %s119
    %p123 = scmp.eq.s32.totalorder %s20, 0
    %p124 = por %p122, %p123
    %p125 = scmp.ne.s32.totalorder %s117, %s119
    %p126 = scmp.eq.s32.totalorder %s25, 1
    %p127 = por %p125, %p126
    %p128 = scmp.ne.s32.totalorder %s119, %s120
    %p129 = scmp.eq.s32.totalorder %s25, 0
    %p130 = por %p128, %p129
    %p131 = scmp.ne.s32.totalorder %s119, %s120
    %p132 = scmp.eq.s32.totalorder %s26, 1
    %p133 = por %p131, %p132
    %p135 = scmp.ne.s32.totalorder %s120, %s134
    %p136 = scmp.eq.s32.totalorder %s26, 0
    %p137 = por %p135, %p136
    %s139 = sadd.s32 %s138, 1
    %p142 = scmp.eq.s32.totalorder %s20, 1
    %p143 = scmp.ne.s32.totalorder %s138, %s140
    %p144 = scmp.eq.s32.totalorder %s20, 0
    %p145 = por %p143, %p144
    %p146 = scmp.ne.s32.totalorder %s138, %s140
    %p147 = scmp.eq.s32.totalorder %s25, 1
    %p148 = por %p146, %p147
    %p149 = scmp.ne.s32.totalorder %s140, %s141
    %p150 = scmp.eq.s32.totalorder %s25, 0
    %p151 = por %p149, %p150
    %p152 = scmp.ne.s32.totalorder %s140, %s141
    %p153 = scmp.eq.s32.totalorder %s26, 1
    %p154 = por %p152, %p153
    %p156 = scmp.ne.s32.totalorder %s141, %s155
    %p157 = scmp.eq.s32.totalorder %s26, 0
    %p158 = por %p156, %p157
    %s160 = sadd.s32 %s159, 1
    %p163 = scmp.eq.s32.totalorder %s20, 1
    %p164 = scmp.ne.s32.totalorder %s159, %s161
    %p165 = scmp.eq.s32.totalorder %s20, 0
    %p166 = por %p164, %p165
    %p167 = scmp.ne.s32.totalorder %s159, %s161
    %p168 = scmp.eq.s32.totalorder %s25, 1
    %p169 = por %p167, %p168
    %p170 = scmp.ne.s32.totalorder %s161, %s162
    %p171 = scmp.eq.s32.totalorder %s25, 0
    %p172 = por %p170, %p171
    %p173 = scmp.ne.s32.totalorder %s161, %s162
    %p174 = scmp.eq.s32.totalorder %s26, 1
    %p175 = por %p173, %p174
    %p177 = scmp.ne.s32.totalorder %s162, %s176
    %p178 = scmp.eq.s32.totalorder %s26, 0
    %p179 = por %p177, %p178
    %s181 = sadd.s32 %s180, 1
    %p184 = scmp.eq.s32.totalorder %s20, 1
    %p185 = scmp.ne.s32.totalorder %s180, %s182
    %p186 = scmp.eq.s32.totalorder %s20, 0
    %p187 = por %p185, %p186
    %p188 = scmp.ne.s32.totalorder %s180, %s182
    %p189 = scmp.eq.s32.totalorder %s25, 1
    %p190 = por %p188, %p189
    %p191 = scmp.ne.s32.totalorder %s182, %s183
    %p192 = scmp.eq.s32.totalorder %s25, 0
    %p193 = por %p191, %p192
    %p194 = scmp.ne.s32.totalorder %s182, %s183
    %p195 = scmp.eq.s32.totalorder %s26, 1
    %p196 = por %p194, %p195
    %p198 = scmp.ne.s32.totalorder %s183, %s197
    %p199 = scmp.eq.s32.totalorder %s26, 0
    %p200 = por %p198, %p199
    %s202 = sadd.s32 %s201, 1
    %p205 = scmp.eq.s32.totalorder %s20, 1
    %p206 = scmp.ne.s32.totalorder %s201, %s203
    %p207 = scmp.eq.s32.totalorder %s20, 0
    %p208 = por %p206, %p207
    %p209 = scmp.ne.s32.totalorder %s201, %s203
    %p210 = scmp.eq.s32.totalorder %s25, 1
    %p211 = por %p209, %p210
    %p212 = scmp.ne.s32.totalorder %s203, %s204
    %p213 = scmp.eq.s32.totalorder %s25, 0
    %p214 = por %p212, %p213
    %p215 = scmp.ne.s32.totalorder %s203, %s204
    %p216 = scmp.eq.s32.totalorder %s26, 1
    %p217 = por %p215, %p216
    %p219 = scmp.ne.s32.totalorder %s204, %s218
    %p220 = scmp.eq.s32.totalorder %s26, 0
    %p221 = por %p219, %p220
    %s223 = sadd.s32 %s222, 1
    %p226 = scmp.eq.s32.totalorder %s20, 1
    %p227 = scmp.ne.s32.totalorder %s222, %s224
    %p228 = scmp.eq.s32.totalorder %s20, 0
    %p229 = por %p227, %p228
    %p230 = scmp.ne.s32.totalorder %s222, %s224
    %p231 = scmp.eq.s32.totalorder %s25, 1
    %p232 = por %p230, %p231
    %p233 = scmp.ne.s32.totalorder %s224, %s225
    %p234 = scmp.eq.s32.totalorder %s25, 0
    %p235 = por %p233, %p234
    %p236 = scmp.ne.s32.totalorder %s224, %s225
    %p237 = scmp.eq.s32.totalorder %s26, 1
    %p238 = por %p236, %p237
    %p240 = scmp.ne.s32.totalorder %s225, %s239
    %p241 = scmp.eq.s32.totalorder %s26, 0
    %p242 = por %p240, %p241
    %s243 = ssub.s32 %s20, %s27
    %p244 = scmp.eq.s32.totalorder %s243, 0
    %s246 = sadd.s32 %s245, 1
    %s247 = scalar_select %p244, %s245, %s246
    %p250 = pneg %p244
    %p251 = scmp.eq.s32.totalorder %s20, 1
    %p252 = por %p250, %p251
    %p253 = scmp.ne.s32.totalorder %s245, %s248
    %p254 = scmp.eq.s32.totalorder %s20, 0
    %p255 = por %p253, %p254
    %p256 = scmp.ne.s32.totalorder %s245, %s248
    %p257 = scmp.eq.s32.totalorder %s25, 1
    %p258 = por %p256, %p257
    %p259 = scmp.ne.s32.totalorder %s248, %s249
    %p260 = scmp.eq.s32.totalorder %s25, 0
    %p261 = por %p259, %p260
    %p262 = scmp.ne.s32.totalorder %s248, %s249
    %p263 = scmp.eq.s32.totalorder %s26, 1
    %p264 = por %p262, %p263
    %p266 = scmp.ne.s32.totalorder %s249, %s265
    %p267 = scmp.eq.s32.totalorder %s26, 0
    %p268 = por %p266, %p267
    %s269 = ssub.s32 %s20, %s27
    %p270 = scmp.eq.s32.totalorder %s269, 0
    %s272 = sadd.s32 %s271, 1
    %s273 = scalar_select %p270, %s271, %s272
    %p276 = pneg %p270
    %p277 = scmp.eq.s32.totalorder %s20, 1
    %p278 = por %p276, %p277
    %p279 = scmp.ne.s32.totalorder %s271, %s274
    %p280 = scmp.eq.s32.totalorder %s20, 0
    %p281 = por %p279, %p280
    %p282 = scmp.ne.s32.totalorder %s271, %s274
    %p283 = scmp.eq.s32.totalorder %s25, 1
    %p284 = por %p282, %p283
    %p285 = scmp.ne.s32.totalorder %s274, %s275
    %p286 = scmp.eq.s32.totalorder %s25, 0
    %p287 = por %p285, %p286
    %p288 = scmp.ne.s32.totalorder %s274, %s275
    %p289 = scmp.eq.s32.totalorder %s26, 1
    %p290 = por %p288, %p289
    %p292 = scmp.ne.s32.totalorder %s275, %s291
    %p293 = scmp.eq.s32.totalorder %s26, 0
    %p294 = por %p292, %p293
    %p295 = scmp.le.s32.totalorder 1, %s20
    %p296 = scmp.lt.s32.totalorder %s20, 3
    %p297 = pnand %p295, %p296
    %p298 = pneg %p297
    // Predicated region
    $region9: #{_lambda_.1} parent=5 // pred_check
      _
    $region10: #{_lambda_.1} parent=5 // pred_check_branch
      %300 = sbr.rel (%p297) target = $region12
    $region11: #{_lambda_.1} parent=5 // pred_region
      %s301 = ssub.s32 %s20, 1
      // Predicated region
      $region13: #{_lambda_.1} parent=11 // pred_check
        %p302 = pneg %p67
      $region14: #{_lambda_.1} parent=11 // pred_check_branch
        %304 = sbr.rel (%p302) target = $region16
      $region15: #{_lambda_.1} parent=11 // pred_region
        _
      $region16: #{_lambda_.1} parent=11 // pred_fallthru
        _
      // Predicated region
      $region17: #{_lambda_.1} parent=11 // pred_check
        %p305 = pneg %p88
      $region18: #{_lambda_.1} parent=11 // pred_check_branch
        %307 = sbr.rel (%p305) target = $region20
      $region19: #{_lambda_.1} parent=11 // pred_region
        _
      $region20: #{_lambda_.1} parent=11 // pred_fallthru
        _
      // Predicated region
      $region21: #{_lambda_.1} parent=11 // pred_check
        %p308 = pneg %p109
      $region22: #{_lambda_.1} parent=11 // pred_check_branch
        %310 = sbr.rel (%p308) target = $region24
      $region23: #{_lambda_.1} parent=11 // pred_region
        _
      $region24: #{_lambda_.1} parent=11 // pred_fallthru
        _
      // Predicated region
      $region25: #{_lambda_.1} parent=11 // pred_check
        %p311 = pneg %p130
      $region26: #{_lambda_.1} parent=11 // pred_check_branch
        %313 = sbr.rel (%p311) target = $region28
      $region27: #{_lambda_.1} parent=11 // pred_region
        _
      $region28: #{_lambda_.1} parent=11 // pred_fallthru
        _
      // Predicated region
      $region29: #{_lambda_.1} parent=11 // pred_check
        %p314 = pneg %p151
      $region30: #{_lambda_.1} parent=11 // pred_check_branch
        %316 = sbr.rel (%p314) target = $region32
      $region31: #{_lambda_.1} parent=11 // pred_region
        _
      $region32: #{_lambda_.1} parent=11 // pred_fallthru
        _
      // Predicated region
      $region33: #{_lambda_.1} parent=11 // pred_check
        %p317 = pneg %p172
      $region34: #{_lambda_.1} parent=11 // pred_check_branch
        %319 = sbr.rel (%p317) target = $region36
      $region35: #{_lambda_.1} parent=11 // pred_region
        _
      $region36: #{_lambda_.1} parent=11 // pred_fallthru
        _
      // Predicated region
      $region37: #{_lambda_.1} parent=11 // pred_check
        %p320 = pneg %p193
      $region38: #{_lambda_.1} parent=11 // pred_check_branch
        %322 = sbr.rel (%p320) target = $region40
      $region39: #{_lambda_.1} parent=11 // pred_region
        _
      $region40: #{_lambda_.1} parent=11 // pred_fallthru
        _
      // Predicated region
      $region41: #{_lambda_.1} parent=11 // pred_check
        %p323 = pneg %p214
      $region42: #{_lambda_.1} parent=11 // pred_check_branch
        %325 = sbr.rel (%p323) target = $region44
      $region43: #{_lambda_.1} parent=11 // pred_region
        _
      $region44: #{_lambda_.1} parent=11 // pred_fallthru
        _
      // Predicated region
      $region45: #{_lambda_.1} parent=11 // pred_check
        %p326 = pneg %p235
      $region46: #{_lambda_.1} parent=11 // pred_check_branch
        %328 = sbr.rel (%p326) target = $region48
      $region47: #{_lambda_.1} parent=11 // pred_region
        _
      $region48: #{_lambda_.1} parent=11 // pred_fallthru
        _
    $region12: #{_lambda_.1} parent=5 // pred_fallthru
      _
    %p329 = scmp.lt.s32.totalorder %s20, 2
    // Predicated region
    $region49: #{_lambda_.1} parent=5 // pred_check
      %p330 = pneg %p329
    $region50: #{_lambda_.1} parent=5 // pred_check_branch
      %332 = sbr.rel (%p330) target = $region52
    $region51: #{_lambda_.1} parent=5 // pred_region
      // Predicated region
      $region53: #{_lambda_.1} parent=51 // pred_check
        %p333 = pneg %p40
      $region54: #{_lambda_.1} parent=51 // pred_check_branch
        %335 = sbr.rel (%p333) target = $region56
      $region55: #{_lambda_.1} parent=51 // pred_region
        %p336 = scmp.lt.s32.totalorder %s20, 1
        %s337 = scalar_select %p336, %s20, 1
        %s338 = smul.addr %s337, 3
        %s339 = smul.addr %s338, 4
        %s340 = scalar_lea.vmem %s0, %s339
      $region56: #{_lambda_.1} parent=51 // pred_fallthru
        _
    $region52: #{_lambda_.1} parent=5 // pred_fallthru
      _
    %p341 = scmp.le.s32.totalorder 1, %s20
    %p342 = scmp.lt.s32.totalorder %s20, 3
    %p343 = pnand %p341, %p342
    %p344 = pneg %p343
    // Predicated region
    $region57: #{_lambda_.1} parent=5 // pred_check
      _
    $region58: #{_lambda_.1} parent=5 // pred_check_branch
      %346 = sbr.rel (%p343) target = $region60
    $region59: #{_lambda_.1} parent=5 // pred_region
      %s347 = ssub.s32 %s20, 1
      %p348 = scmp.lt.s32.totalorder %s25, 1
      %s349 = scalar_select %p348, %s25, 1
      %s350 = smul.addr %s349, 3
      %s351 = smul.addr %s350, 4
      %s352 = scalar_lea.vmem %s0, %s351
      %p353 = pneg %p46
      %p354 = pneg %p43
      %p355 = pneg %p67
      %p356 = pneg %p64
      %p357 = pneg %p88
      %p358 = pneg %p85
      %p359 = pneg %p109
      %p360 = pneg %p106
      %p361 = pneg %p130
      %p362 = pneg %p127
      %p363 = pneg %p151
      %p364 = pneg %p148
      %p365 = pneg %p172
      %p366 = pneg %p169
      %p367 = pneg %p193
      %p368 = pneg %p190
      %p369 = pneg %p214
      %p370 = pneg %p211
      %p371 = pneg %p235
      %p372 = pneg %p232
      %p373 = pneg %p261
      %p374 = pneg %p258
      %p375 = scmp.lt.s32.totalorder %s25, 1
      %s376 = scalar_select %p375, %s25, 1
      %s377 = scalar_lea.vmem %s10, %s376
      %p378 = pneg %p287
      %p379 = pneg %p284
      %p380 = scmp.lt.s32.totalorder %s25, 1
      %s381 = scalar_select %p380, %s25, 1
      %s382 = smul.addr %s381, 4
      %s383 = smul.addr %s382, 8
      %s384 = scalar_lea.vmem %s11, %s383
      %p385 = scmp.lt.s32.totalorder %s25, 1
      %s386 = scalar_select %p385, %s25, 1
      %s387 = smul.addr %s386, 3
      %s388 = smul.addr %s387, 4
      %s389 = scalar_lea.vmem %s0, %s388
      %p390 = scmp.lt.s32.totalorder %s25, 1
      %s391 = scalar_select %p390, %s25, 1
      %s392 = scalar_lea.vmem %s10, %s391
      %p393 = scmp.lt.s32.totalorder %s25, 1
      %s394 = scalar_select %p393, %s25, 1
      %s395 = smul.addr %s394, 4
      %s396 = smul.addr %s395, 8
      %s397 = scalar_lea.vmem %s11, %s396
      %v398 = vld [vmem:[%s2] sm:$0xff]
      %v399 = vld [vmem:[%s3] sm:$0xff]
      %v400 = vld [vmem:[%s389] sm:$0xff]
      %v401 = vld [vmem:[%s389 + $0x8] sm:$0xf]
      %v403 = vcombine.high %v400, %v400
      %405 = vst [vmem:[#allocation2] sm:$0xf] %v400
      %406 = vst [vmem:[#allocation2 + $0x8] sm:$0xf] %v403
      %vm407 = vcmask 257024
      %408 = vst.msk [vmem:[#allocation2 + $0x10] sm:$0xf] %vm407, %v401
      %v409 = vld [vmem:[%s389] sm:$0xff]
      %v410 = vld [vmem:[%s389 + $0x8] sm:$0xf]
      %v413 = vcombine.low %v409, %v409
      %v414 = vcombine.low %v410, %v410
      %415 = vrot.lane.b32.xlu0 %v413, 127
      %v416 = vpop.permute.xlu0 %415
      %417 = vrot.lane.b32.xlu0 %v409, 127
      %v418 = vpop.permute.xlu0 %417
      %419 = vrot.lane.b32.xlu0 %v414, 127
      %v420 = vpop.permute.xlu0 %419
      %vm421 = vcmask 1039360
      %v422 = vsel %vm421, %v416, %v418
      %v423 = vsel %vm421, %v418, %v420
      %427 = vst [vmem:[#allocation2] sm:$0xf0] %v422
      %428 = vst [vmem:[#allocation2 + $0x8] sm:$0xf0] %v423
      %vm429 = vcmask 261124
      %430 = vst.msk [vmem:[#allocation2 + $0x10] sm:$0xf0] %vm429, %v420
      %v431 = vld [vmem:[%s389] sm:$0xff]
      %v432 = vld [vmem:[%s389 + $0x8] sm:$0xf]
      %v435 = vcombine.high %v431, %v431
      %436 = vrot.lane.b32.xlu0 %v431, 126
      %v437 = vpop.permute.xlu0 %436
      %438 = vrot.lane.b32.xlu0 %v435, 126
      %v439 = vpop.permute.xlu0 %438
      %440 = vrot.lane.b32.xlu0 %v432, 126
      %v441 = vpop.permute.xlu0 %440
      %vm442 = vcmask 1031168
      %v443 = vsel %vm442, %v437, %v439
      %v444 = vsel %vm442, %v439, %v441
      %448 = vst [vmem:[#allocation2 + $0x18] sm:$0xf] %v443
      %449 = vst [vmem:[#allocation2 + $0x20] sm:$0xf] %v444
      %450 = vst.msk [vmem:[#allocation2 + $0x28] sm:$0xf] %vm407, %v441
      %v451 = vld [vmem:[%s389] sm:$0xff]
      %v452 = vld [vmem:[%s389 + $0x8] sm:$0xf]
      %v455 = vcombine.low %v451, %v451
      %v456 = vcombine.low %v452, %v452
      %457 = vrot.lane.b32.xlu0 %v455, 110
      %v458 = vpop.permute.xlu0 %457
      %459 = vrot.lane.b32.xlu0 %v451, 110
      %v460 = vpop.permute.xlu0 %459
      %461 = vrot.lane.b32.xlu0 %v456, 110
      %v462 = vpop.permute.xlu0 %461
      %vm463 = vcmask 900096
      %v464 = vsel %vm463, %v458, %v460
      %v465 = vsel %vm463, %v460, %v462
      %469 = vst [vmem:[#allocation2 + $0x18] sm:$0xf0] %v464
      %470 = vst [vmem:[#allocation2 + $0x20] sm:$0xf0] %v465
      %471 = vst.msk [vmem:[#allocation2 + $0x28] sm:$0xf0] %vm429, %v462
      %v472 = vld [vmem:[%s389] sm:$0xff]
      %v473 = vld [vmem:[%s389 + $0x8] sm:$0xf]
      %v476 = vcombine.high %v472, %v472
      %477 = vrot.lane.b32.xlu0 %v472, 109
      %v478 = vpop.permute.xlu0 %477
      %479 = vrot.lane.b32.xlu0 %v476, 109
      %v480 = vpop.permute.xlu0 %479
      %481 = vrot.lane.b32.xlu0 %v473, 109
      %v482 = vpop.permute.xlu0 %481
      %vm483 = vcmask 891904
      %v484 = vsel %vm483, %v478, %v480
      %v485 = vsel %vm483, %v480, %v482
      %489 = vst [vmem:[#allocation2 + $0x30] sm:$0xf] %v484
      %490 = vst [vmem:[#allocation2 + $0x38] sm:$0xf] %v485
      %491 = vst.msk [vmem:[#allocation2 + $0x40] sm:$0xf] %vm407, %v482
      %v492 = vld [vmem:[%s389] sm:$0xff]
      %v493 = vld [vmem:[%s389 + $0x8] sm:$0xf]
      %v496 = vcombine.low %v492, %v492
      %v497 = vcombine.low %v493, %v493
      %498 = vrot.lane.b32.xlu0 %v496, 108
      %v499 = vpop.permute.xlu0 %498
      %500 = vrot.lane.b32.xlu0 %v492, 108
      %v501 = vpop.permute.xlu0 %500
      %502 = vrot.lane.b32.xlu0 %v497, 108
      %v503 = vpop.permute.xlu0 %502
      %vm504 = vcmask 883712
      %v505 = vsel %vm504, %v499, %v501
      %v506 = vsel %vm504, %v501, %v503
      %510 = vst [vmem:[#allocation2 + $0x30] sm:$0xf0] %v505
      %511 = vst [vmem:[#allocation2 + $0x38] sm:$0xf0] %v506
      %512 = vst.msk [vmem:[#allocation2 + $0x40] sm:$0xf0] %vm429, %v503
      %v513 = vld [vmem:[%s389] sm:$0xff]
      %v514 = vld [vmem:[%s389 + $0x8] sm:$0xf]
      %v517 = vcombine.high %v513, %v513
      %518 = vrot.lane.b32.xlu0 %v513, 92
      %v519 = vpop.permute.xlu0 %518
      %520 = vrot.lane.b32.xlu0 %v517, 92
      %v521 = vpop.permute.xlu0 %520
      %522 = vrot.lane.b32.xlu0 %v514, 92
      %v523 = vpop.permute.xlu0 %522
      %vm524 = vcmask 752640
      %v525 = vsel %vm524, %v519, %v521
      %v526 = vsel %vm524, %v521, %v523
      %530 = vst [vmem:[#allocation2 + $0x48] sm:$0xf] %v525
      %531 = vst [vmem:[#allocation2 + $0x50] sm:$0xf] %v526
      %532 = vst.msk [vmem:[#allocation2 + $0x58] sm:$0xf] %vm407, %v523
      %v533 = vld [vmem:[%s389] sm:$0xff]
      %v534 = vld [vmem:[%s389 + $0x8] sm:$0xf]
      %v537 = vcombine.low %v533, %v533
      %v538 = vcombine.low %v534, %v534
      %539 = vrot.lane.b32.xlu0 %v537, 91
      %v540 = vpop.permute.xlu0 %539
      %541 = vrot.lane.b32.xlu0 %v533, 91
      %v542 = vpop.permute.xlu0 %541
      %543 = vrot.lane.b32.xlu0 %v538, 91
      %v544 = vpop.permute.xlu0 %543
      %vm545 = vcmask 744448
      %v546 = vsel %vm545, %v540, %v542
      %v547 = vsel %vm545, %v542, %v544
      %551 = vst [vmem:[#allocation2 + $0x48] sm:$0xf0] %v546
      %552 = vst [vmem:[#allocation2 + $0x50] sm:$0xf0] %v547
      %553 = vst.msk [vmem:[#allocation2 + $0x58] sm:$0xf0] %vm429, %v544
      %v554 = vld [vmem:[%s389] sm:$0xff]
      %v555 = vld [vmem:[%s389 + $0x8] sm:$0xf]
      %v558 = vcombine.high %v554, %v554
      %559 = vrot.lane.b32.xlu0 %v554, 90
      %v560 = vpop.permute.xlu0 %559
      %561 = vrot.lane.b32.xlu0 %v558, 90
      %v562 = vpop.permute.xlu0 %561
      %563 = vrot.lane.b32.xlu0 %v555, 90
      %v564 = vpop.permute.xlu0 %563
      %vm565 = vcmask 736256
      %v566 = vsel %vm565, %v560, %v562
      %v567 = vsel %vm565, %v562, %v564
      %571 = vst [vmem:[#allocation2 + $0x60] sm:$0xf] %v566
      %572 = vst [vmem:[#allocation2 + $0x68] sm:$0xf] %v567
      %573 = vst.msk [vmem:[#allocation2 + $0x70] sm:$0xf] %vm407, %v564
      %v574 = vld [vmem:[#allocation2] sm:$0xff]
      %v575 = vld [vmem:[#allocation2 + $0x8] sm:$0xff]
      %v576 = vld [vmem:[#allocation2 + $0x10] sm:$0xff]
      %v577 = vld [vmem:[#allocation2 + $0x18] sm:$0xff]
      %v578 = vld [vmem:[#allocation2 + $0x20] sm:$0xff]
      %v579 = vld [vmem:[#allocation2 + $0x28] sm:$0xff]
      %v580 = vld [vmem:[#allocation2 + $0x30] sm:$0xff]
      %v581 = vld [vmem:[#allocation2 + $0x38] sm:$0xff]
      %v582 = vld [vmem:[#allocation2 + $0x40] sm:$0xff]
      %v583 = vld [vmem:[#allocation2 + $0x48] sm:$0xff]
      %v584 = vld [vmem:[#allocation2 + $0x50] sm:$0xff]
      %v585 = vld [vmem:[#allocation2 + $0x58] sm:$0xff]
      %v586 = vld [vmem:[#allocation2 + $0x60] sm:$0xf]
      %v587 = vld [vmem:[#allocation2 + $0x68] sm:$0xf]
      %v588 = vld [vmem:[#allocation2 + $0x70] sm:$0xf]
      %590 = vset.pattern.permute.xlu0 0
      %591 = vperm.xlu0 %590, %v399
      %v592 = vpop.permute.xlu0 %591
      %vm594 = vcmask 293888
      %v596 = vsel %vm594, %v398, 0
      %vm598 = vcmask 1043456
      %v600 = vsel %vm598, %v586, 0
      %v603 = vsel %vm598, %v587, 0
      %v606 = vsel %vm598, %v588, 0
      %608 = vmatprep.subr.mxu0 %v575
      %609 = vmatpush1.msra.mxu0 %v574
      %610 = vmatprep.subr.mxu0 %v578
      %611 = vmatpush1.msra.mxu0 %v577
      %612 = vmatprep.subr.mxu0 %v581
      %613 = vmatpush1.msra.mxu0 %v580
      %614 = vmatprep.subr.mxu0 %v584
      %615 = vmatpush1.msra.mxu0 %v583
      %616 = vmatprep.subr.mxu0 %v603
      %617 = vmatpush1.msra.mxu0 %v600
      %618 = vmatprep.subr.mxu0 0.0
      %619 = vmatpush1.msra.mxu0 0.0
      %620 = vmatprep.subr.mxu0 0.0
      %621 = vmatpush1.msra.mxu0 0.0
      %622 = vmatprep.subr.mxu0 0.0
      %623 = vmatpush1.msra.mxu0 0.0
      %624 = vmatprep.subr.mxu0 0.0
      %625 = vmatpush1.msra.mxu0 0.0
      %626 = vmatprep.subr.mxu0 0.0
      %627 = vmatpush1.msra.mxu0 0.0
      %628 = vmatprep.subr.mxu0 0.0
      %629 = vmatpush1.msra.mxu0 0.0
      %630 = vmatprep.subr.mxu0 0.0
      %631 = vmatpush1.msra.mxu0 0.0
      %632 = vmatprep.subr.mxu0 0.0
      %633 = vmatpush1.msra.mxu0 0.0
      %634 = vmatprep.subr.mxu0 0.0
      %635 = vmatpush1.msra.mxu0 0.0
      %636 = vmatprep.subr.mxu0 0.0
      %637 = vmatpush1.msra.mxu0 0.0
      %638 = vmatprep.subr.mxu0 0.0
      %639 = vmatpush1.msra.mxu0 0.0
      %640 = vmatprep.subr.mxu0 0.0
      %641 = vmatpush1.msra.mxu0 0.0
      %642 = vmatprep.subr.mxu0 0.0
      %643 = vmatpush1.msra.mxu0 0.0
      %644 = vmatprep.subr.mxu0 0.0
      %645 = vmatpush1.msra.mxu0 0.0
      %646 = vmatprep.subr.mxu0 0.0
      %647 = vmatpush1.msra.mxu0 0.0
      %648 = vmatprep.subr.mxu0 0.0
      %649 = vmatpush1.msra.mxu0 0.0
      %650 = vmatprep.subr.mxu0 0.0
      %651 = vmatpush1.msra.mxu0 0.0
      %652 = vmatprep.subr.mxu0 0.0
      %653 = vmatpush1.msra.mxu0 0.0
      %654 = vmatprep.subr.mxu0 0.0
      %655 = vmatpush1.msra.mxu0 0.0
      %656 = vmatprep.subr.mxu0 0.0
      %657 = vmatpush1.msra.mxu0 0.0
      %658 = vmatprep.subr.mxu0 0.0
      %659 = vmatpush1.msra.mxu0 0.0
      %660 = vmatprep.subr.mxu0 0.0
      %661 = vmatpush1.msra.mxu0 0.0
      %662 = vmatprep.subr.mxu0 0.0
      %663 = vmatpush1.msra.mxu0 0.0
      %664 = vmatprep.subr.mxu0 0.0
      %665 = vmatpush1.msra.mxu0 0.0
      %666 = vmatprep.subr.mxu0 0.0
      %667 = vmatpush1.msra.mxu0 0.0
      %668 = vmatprep.subr.mxu0 0.0
      %669 = vmatpush1.msra.mxu0 0.0
      %670 = vmatprep.subr.mxu0 0.0
      %671 = vmatpush1.msra.mxu0 0.0
      %672 = vmatprep.mubr.f32.mxu0 0.0
      %673 = vmatmul.mubr.f32.gmra.mrb[0].mxu0 %v596
      %v674 = vpop.f32.mrb[0].mxu0
      %v675 = vadd.f32 %v592, %v674
      %v676 = vpop.f32.mrb[0].mxu0
      %v677 = vadd.f32 %v592, %v676
      %678 = vdwg.mxu0
      %679 = vmatprep.subr.mxu0 0.0
      %680 = vmatpush1.msra.mxu0 %v576
      %681 = vmatprep.subr.mxu0 0.0
      %682 = vmatpush1.msra.mxu0 %v579
      %683 = vmatprep.subr.mxu0 0.0
      %684 = vmatpush1.msra.mxu0 %v582
      %685 = vmatprep.subr.mxu0 0.0
      %686 = vmatpush1.msra.mxu0 %v585
      %687 = vmatprep.subr.mxu0 0.0
      %688 = vmatpush1.msra.mxu0 %v606
      %689 = vmatprep.subr.mxu0 0.0
      %690 = vmatpush1.msra.mxu0 0.0
      %691 = vmatprep.subr.mxu0 0.0
      %692 = vmatpush1.msra.mxu0 0.0
      %693 = vmatprep.subr.mxu0 0.0
      %694 = vmatpush1.msra.mxu0 0.0
      %695 = vmatprep.subr.mxu0 0.0
      %696 = vmatpush1.msra.mxu0 0.0
      %697 = vmatprep.subr.mxu0 0.0
      %698 = vmatpush1.msra.mxu0 0.0
      %699 = vmatprep.subr.mxu0 0.0
      %700 = vmatpush1.msra.mxu0 0.0
      %701 = vmatprep.subr.mxu0 0.0
      %702 = vmatpush1.msra.mxu0 0.0
      %703 = vmatprep.subr.mxu0 0.0
      %704 = vmatpush1.msra.mxu0 0.0
      %705 = vmatprep.subr.mxu0 0.0
      %706 = vmatpush1.msra.mxu0 0.0
      %707 = vmatprep.subr.mxu0 0.0
      %708 = vmatpush1.msra.mxu0 0.0
      %709 = vmatprep.subr.mxu0 0.0
      %710 = vmatpush1.msra.mxu0 0.0
      %711 = vmatprep.subr.mxu0 0.0
      %712 = vmatpush1.msra.mxu0 0.0
      %713 = vmatprep.subr.mxu0 0.0
      %714 = vmatpush1.msra.mxu0 0.0
      %715 = vmatprep.subr.mxu0 0.0
      %716 = vmatpush1.msra.mxu0 0.0
      %717 = vmatprep.subr.mxu0 0.0
      %718 = vmatpush1.msra.mxu0 0.0
      %719 = vmatprep.subr.mxu0 0.0
      %720 = vmatpush1.msra.mxu0 0.0
      %721 = vmatprep.subr.mxu0 0.0
      %722 = vmatpush1.msra.mxu0 0.0
      %723 = vmatprep.subr.mxu0 0.0
      %724 = vmatpush1.msra.mxu0 0.0
      %725 = vmatprep.subr.mxu0 0.0
      %726 = vmatpush1.msra.mxu0 0.0
      %727 = vmatprep.subr.mxu0 0.0
      %728 = vmatpush1.msra.mxu0 0.0
      %729 = vmatprep.subr.mxu0 0.0
      %730 = vmatpush1.msra.mxu0 0.0
      %731 = vmatprep.subr.mxu0 0.0
      %732 = vmatpush1.msra.mxu0 0.0
      %733 = vmatprep.subr.mxu0 0.0
      %734 = vmatpush1.msra.mxu0 0.0
      %735 = vmatprep.subr.mxu0 0.0
      %736 = vmatpush1.msra.mxu0 0.0
      %737 = vmatprep.subr.mxu0 0.0
      %738 = vmatpush1.msra.mxu0 0.0
      %739 = vmatprep.subr.mxu0 0.0
      %740 = vmatpush1.msra.mxu0 0.0
      %741 = vmatprep.subr.mxu0 0.0
      %742 = vmatpush1.msra.mxu0 0.0
      %743 = vmatprep.mubr.f32.mxu0 0.0
      %744 = vmatmul.mubr.f32.gmra.mrb[0].mxu0 %v596
      %v745 = vpop.f32.mrb[0].mxu0
      %v746 = vadd.f32 %v592, %v745
      %v747 = vpop.f32.mrb[0].mxu0
      %748 = vdwg.mxu0
      %v749 = vmax.f32 %v675, 0.0
      %v750 = vmax.f32 %v677, 0.0
      %v751 = vmax.f32 %v746, 0.0
      %v752 = vld [vmem:[%s1] sm:$0x7]
      %v754 = vlaneseq
      %v755 = vshrl.u32 %v754, 7
      %v756 = vsub.s32 0, %v755
      %v757 = vrot.slane %v752, %v756
      %v758 = vlaneseq
      %v759 = vshrl.u32 %v758, 7
      %v760 = vsub.s32 1, %v759
      %v761 = vrot.slane %v752, %v760
      %v762 = vlaneseq
      %v763 = vshrl.u32 %v762, 7
      %v764 = vsub.s32 2, %v763
      %v765 = vrot.slane %v752, %v764
      %v769 = vmul.f32 %v749, %v757
      %v770 = vmul.f32 %v750, %v761
      %v771 = vmul.f32 %v751, %v765
      %v772 = vadd.f32 %v769, %v770
      %vm773 = vcmask 261120
      %v774 = vsel %vm773, %v771, 0.0
      %v775 = vadd.f32 %v772, %v774
      %776 = vadd.xlane.f32.xlu0 %v775
      %v777 = vpop.xlane.xlu0 %776
      %v778 = vadd.f32 %v777, 0.0
      %v779 = vmul.f32 %v778, 0.00390625
      %v780 = vld [vmem:[%s4] sm:$0xff]
      %v781 = vld [vmem:[%s4 + $0x8] sm:$0xff]
      %v782 = vld [vmem:[%s4 + $0x10] sm:$0xff]
      %v783 = vld [vmem:[%s4 + $0x18] sm:$0xff]
      %v784 = vld [vmem:[%s5] sm:$0xff]
      %v785 = vld [vmem:[%s5 + $0x8] sm:$0xff]
      %v786 = vld [vmem:[%s5 + $0x10] sm:$0xff]
      %v787 = vld [vmem:[%s5 + $0x18] sm:$0xff]
      %vm788 = vcmask 64512
      %v790 = vsel %vm788, %v780, 0
      %v793 = vsel %vm788, %v781, 0
      %v796 = vsel %vm788, %v782, 0
      %v799 = vsel %vm788, %v783, 0
      %801 = vmatprep.subr.mxu0 0.0
      %802 = vmatpush1.msra.mxu0 %v779
      %803 = vmatprep.subr.mxu0 0.0
      %804 = vmatpush1.msra.mxu0 0.0
      %805 = vmatprep.subr.mxu0 0.0
      %806 = vmatpush1.msra.mxu0 0.0
      %807 = vmatprep.subr.mxu0 0.0
      %808 = vmatpush1.msra.mxu0 0.0
      %809 = vmatprep.subr.mxu0 0.0
      %810 = vmatpush1.msra.mxu0 0.0
      %811 = vmatprep.subr.mxu0 0.0
      %812 = vmatpush1.msra.mxu0 0.0
      %813 = vmatprep.subr.mxu0 0.0
      %814 = vmatpush1.msra.mxu0 0.0
      %815 = vmatprep.subr.mxu0 0.0
      %816 = vmatpush1.msra.mxu0 0.0
      %817 = vmatprep.subr.mxu0 0.0
      %818 = vmatpush1.msra.mxu0 0.0
      %819 = vmatprep.subr.mxu0 0.0
      %820 = vmatpush1.msra.mxu0 0.0
      %821 = vmatprep.subr.mxu0 0.0
      %822 = vmatpush1.msra.mxu0 0.0
      %823 = vmatprep.subr.mxu0 0.0
      %824 = vmatpush1.msra.mxu0 0.0
      %825 = vmatprep.subr.mxu0 0.0
      %826 = vmatpush1.msra.mxu0 0.0
      %827 = vmatprep.subr.mxu0 0.0
      %828 = vmatpush1.msra.mxu0 0.0
      %829 = vmatprep.subr.mxu0 0.0
      %830 = vmatpush1.msra.mxu0 0.0
      %831 = vmatprep.subr.mxu0 0.0
      %832 = vmatpush1.msra.mxu0 0.0
      %833 = vmatprep.subr.mxu0 0.0
      %834 = vmatpush1.msra.mxu0 0.0
      %835 = vmatprep.subr.mxu0 0.0
      %836 = vmatpush1.msra.mxu0 0.0
      %837 = vmatprep.subr.mxu0 0.0
      %838 = vmatpush1.msra.mxu0 0.0
      %839 = vmatprep.subr.mxu0 0.0
      %840 = vmatpush1.msra.mxu0 0.0
      %841 = vmatprep.subr.mxu0 0.0
      %842 = vmatpush1.msra.mxu0 0.0
      %843 = vmatprep.subr.mxu0 0.0
      %844 = vmatpush1.msra.mxu0 0.0
      %845 = vmatprep.subr.mxu0 0.0
      %846 = vmatpush1.msra.mxu0 0.0
      %847 = vmatprep.subr.mxu0 0.0
      %848 = vmatpush1.msra.mxu0 0.0
      %849 = vmatprep.subr.mxu0 0.0
      %850 = vmatpush1.msra.mxu0 0.0
      %851 = vmatprep.subr.mxu0 0.0
      %852 = vmatpush1.msra.mxu0 0.0
      %853 = vmatprep.subr.mxu0 0.0
      %854 = vmatpush1.msra.mxu0 0.0
      %855 = vmatprep.subr.mxu0 0.0
      %856 = vmatpush1.msra.mxu0 0.0
      %857 = vmatprep.subr.mxu0 0.0
      %858 = vmatpush1.msra.mxu0 0.0
      %859 = vmatprep.subr.mxu0 0.0
      %860 = vmatpush1.msra.mxu0 0.0
      %861 = vmatprep.subr.mxu0 0.0
      %862 = vmatpush1.msra.mxu0 0.0
      %863 = vmatprep.subr.mxu0 0.0
      %864 = vmatpush1.msra.mxu0 0.0
      %865 = vmatprep.mubr.f32.mxu0 0.0
      %866 = vmatmul.mubr.f32.gmra.mrb[0].mxu0 %v790
      %v867 = vpop.f32.mrb[0].mxu0
      %v868 = vadd.f32 %v784, %v867
      %v869 = vpop.f32.mrb[0].mxu0
      %870 = vmatprep.mubr.f32.mxu0 0.0
      %871 = vmatmul.mubr.f32.gmra.mrb[0].mxu0 %v793
      %v872 = vpop.f32.mrb[0].mxu0
      %v873 = vadd.f32 %v785, %v872
      %v874 = vpop.f32.mrb[0].mxu0
      %875 = vmatprep.mubr.f32.mxu0 0.0
      %876 = vmatmul.mubr.f32.gmra.mrb[0].mxu0 %v796
      %v877 = vpop.f32.mrb[0].mxu0
      %v878 = vadd.f32 %v786, %v877
      %v879 = vpop.f32.mrb[0].mxu0
      %880 = vmatprep.mubr.f32.mxu0 0.0
      %881 = vmatmul.mubr.f32.gmra.mrb[0].mxu0 %v799
      %v882 = vpop.f32.mrb[0].mxu0
      %v883 = vadd.f32 %v787, %v882
      %v884 = vpop.f32.mrb[0].mxu0
      %885 = vdwg.mxu0
      %v886 = vmax.f32 %v868, 0.0
      %v887 = vmax.f32 %v873, 0.0
      %v888 = vmax.f32 %v878, 0.0
      %v889 = vmax.f32 %v883, 0.0
      %vm890 = vcmask 7168
      %891 = vst.msk [vmem:[%s397] sm:$0xff] %vm890, %v886
      %892 = vst.msk [vmem:[%s397 + $0x8] sm:$0xff] %vm890, %v887
      %893 = vst.msk [vmem:[%s397 + $0x10] sm:$0xff] %vm890, %v888
      %894 = vst.msk [vmem:[%s397 + $0x18] sm:$0xff] %vm890, %v889
      %v895 = vld [vmem:[%s6] sm:$0xff]
      %v896 = vld [vmem:[%s6 + $0x8] sm:$0xff]
      %v897 = vld [vmem:[%s7] sm:$0xff]
      %v898 = vld [vmem:[%s7 + $0x8] sm:$0xff]
      %v900 = vsel %vm773, %v895, 0
      %v903 = vsel %vm773, %v896, 0
      %905 = vmatprep.subr.mxu0 0.0
      %906 = vmatpush1.msra.mxu0 %v886
      %907 = vmatprep.subr.mxu0 0.0
      %908 = vmatpush1.msra.mxu0 %v887
      %909 = vmatprep.subr.mxu0 0.0
      %910 = vmatpush1.msra.mxu0 %v888
      %911 = vmatprep.subr.mxu0 0.0
      %912 = vmatpush1.msra.mxu0 %v889
      %913 = vmatprep.subr.mxu0 0.0
      %914 = vmatpush1.msra.mxu0 0.0
      %915 = vmatprep.subr.mxu0 0.0
      %916 = vmatpush1.msra.mxu0 0.0
      %917 = vmatprep.subr.mxu0 0.0
      %918 = vmatpush1.msra.mxu0 0.0
      %919 = vmatprep.subr.mxu0 0.0
      %920 = vmatpush1.msra.mxu0 0.0
      %921 = vmatprep.subr.mxu0 0.0
      %922 = vmatpush1.msra.mxu0 0.0
      %923 = vmatprep.subr.mxu0 0.0
      %924 = vmatpush1.msra.mxu0 0.0
      %925 = vmatprep.subr.mxu0 0.0
      %926 = vmatpush1.msra.mxu0 0.0
      %927 = vmatprep.subr.mxu0 0.0
      %928 = vmatpush1.msra.mxu0 0.0
      %929 = vmatprep.subr.mxu0 0.0
      %930 = vmatpush1.msra.mxu0 0.0
      %931 = vmatprep.subr.mxu0 0.0
      %932 = vmatpush1.msra.mxu0 0.0
      %933 = vmatprep.subr.mxu0 0.0
      %934 = vmatpush1.msra.mxu0 0.0
      %935 = vmatprep.subr.mxu0 0.0
      %936 = vmatpush1.msra.mxu0 0.0
      %937 = vmatprep.subr.mxu0 0.0
      %938 = vmatpush1.msra.mxu0 0.0
      %939 = vmatprep.subr.mxu0 0.0
      %940 = vmatpush1.msra.mxu0 0.0
      %941 = vmatprep.subr.mxu0 0.0
      %942 = vmatpush1.msra.mxu0 0.0
      %943 = vmatprep.subr.mxu0 0.0
      %944 = vmatpush1.msra.mxu0 0.0
      %945 = vmatprep.subr.mxu0 0.0
      %946 = vmatpush1.msra.mxu0 0.0
      %947 = vmatprep.subr.mxu0 0.0
      %948 = vmatpush1.msra.mxu0 0.0
      %949 = vmatprep.subr.mxu0 0.0
      %950 = vmatpush1.msra.mxu0 0.0
      %951 = vmatprep.subr.mxu0 0.0
      %952 = vmatpush1.msra.mxu0 0.0
      %953 = vmatprep.subr.mxu0 0.0
      %954 = vmatpush1.msra.mxu0 0.0
      %955 = vmatprep.subr.mxu0 0.0
      %956 = vmatpush1.msra.mxu0 0.0
      %957 = vmatprep.subr.mxu0 0.0
      %958 = vmatpush1.msra.mxu0 0.0
      %959 = vmatprep.subr.mxu0 0.0
      %960 = vmatpush1.msra.mxu0 0.0
      %961 = vmatprep.subr.mxu0 0.0
      %962 = vmatpush1.msra.mxu0 0.0
      %963 = vmatprep.subr.mxu0 0.0
      %964 = vmatpush1.msra.mxu0 0.0
      %965 = vmatprep.subr.mxu0 0.0
      %966 = vmatpush1.msra.mxu0 0.0
      %967 = vmatprep.subr.mxu0 0.0
      %968 = vmatpush1.msra.mxu0 0.0
      %969 = vmatprep.mubr.f32.mxu0 0.0
      %970 = vmatmul.mubr.f32.gmra.mrb[0].mxu0 %v900
      %v971 = vpop.f32.mrb[0].mxu0
      %v972 = vadd.f32 %v897, %v971
      %v973 = vpop.f32.mrb[0].mxu0
      %974 = vmatprep.mubr.f32.mxu0 0.0
      %975 = vmatmul.mubr.f32.gmra.mrb[0].mxu0 %v903
      %v976 = vpop.f32.mrb[0].mxu0
      %v977 = vadd.f32 %v898, %v976
      %v978 = vpop.f32.mrb[0].mxu0
      %979 = vdwg.mxu0
      %v980 = vmax.f32 %v972, 0.0
      %v981 = vmax.f32 %v977, 0.0
      %v982 = vld [vmem:[%s8] sm:$0xff]
      %v983 = vld [vmem:[%s8 + $0x8] sm:$0xff]
      %v984 = vmul.f32 %v982, %v980
      %v985 = vmul.f32 %v983, %v981
      %v986 = vsel %vm890, %v984, 0.0
      %v987 = vsel %vm890, %v985, 0.0
      %v988 = vadd.f32 %v986, %v987
      %v989 = vrot.slane %v988, 4
      %v990 = vadd.f32 %v988, %v989
      %v991 = vrot.slane %v990, 2
      %v992 = vadd.f32 %v990, %v991
      %v993 = vrot.slane %v992, 1
      %v994 = vadd.f32 %v992, %v993
      %v995 = vld [vmem:[#allocation3] sm:$0x1]
      %v996 = vadd.f32 %v994, %v995
      %v997 = vxor.u32 %v996, 2147483648
      %v998 = vmul.f32 %v997, 1.442695
      %v999 = vpow.pop %v998
      %v1000 = vadd.f32 %v999, 1.0
      %v1001 = vrcp.pop %v1000
      %v1002 = vmul.f32 1.0, %v1001
      %vm1003 = vcmask 0
      %1004 = vst.msk [vmem:[%s392] sm:$0x1] %vm1003, %v1002
      %p1005 = scmp.lt.s32.totalorder %s25, 1
      %s1006 = scalar_select %p1005, %s25, 1
      %s1007 = scalar_lea.vmem %s10, %s1006
      %p1008 = scmp.lt.s32.totalorder %s25, 1
      %s1009 = scalar_select %p1008, %s25, 1
      %s1010 = smul.addr %s1009, 4
      %s1011 = smul.addr %s1010, 8
      %s1012 = scalar_lea.vmem %s11, %s1011
      // Predicated region
      $region61: #{_lambda_.1} parent=59 // pred_check
        %p1013 = pneg %p258
      $region62: #{_lambda_.1} parent=59 // pred_check_branch
        %1015 = sbr.rel (%p1013) target = $region64
      $region63: #{_lambda_.1} parent=59 // pred_region
        _
      $region64: #{_lambda_.1} parent=59 // pred_fallthru
        _
      // Predicated region
      $region65: #{_lambda_.1} parent=59 // pred_check
        %p1016 = pneg %p284
      $region66: #{_lambda_.1} parent=59 // pred_check_branch
        %1018 = sbr.rel (%p1016) target = $region68
      $region67: #{_lambda_.1} parent=59 // pred_region
        _
      $region68: #{_lambda_.1} parent=59 // pred_fallthru
        _
    $region60: #{_lambda_.1} parent=5 // pred_fallthru
      _
    %p1019 = scmp.le.s32.totalorder 2, %s20
    // Predicated region
    $region69: #{_lambda_.1} parent=5 // pred_check
      %p1020 = pneg %p1019
    $region70: #{_lambda_.1} parent=5 // pred_check_branch
      %1022 = sbr.rel (%p1020) target = $region72
    $region71: #{_lambda_.1} parent=5 // pred_region
      %s1023 = ssub.s32 %s20, 2
      // Predicated region
      $region73: #{_lambda_.1} parent=71 // pred_check
        %p1024 = pneg %p264
      $region74: #{_lambda_.1} parent=71 // pred_check_branch
        %1026 = sbr.rel (%p1024) target = $region76
      $region75: #{_lambda_.1} parent=71 // pred_region
        %p1027 = scmp.lt.s32.totalorder %s26, 1
        %s1028 = scalar_select %p1027, %s26, 1
        %s1029 = scalar_lea.vmem %s10, %s1028
      $region76: #{_lambda_.1} parent=71 // pred_fallthru
        _
      // Predicated region
      $region77: #{_lambda_.1} parent=71 // pred_check
        %p1030 = pneg %p290
      $region78: #{_lambda_.1} parent=71 // pred_check_branch
        %1032 = sbr.rel (%p1030) target = $region80
      $region79: #{_lambda_.1} parent=71 // pred_region
        %p1033 = scmp.lt.s32.totalorder %s26, 1
        %s1034 = scalar_select %p1033, %s26, 1
        %s1035 = smul.addr %s1034, 4
        %s1036 = smul.addr %s1035, 8
        %s1037 = scalar_lea.vmem %s11, %s1036
      $region80: #{_lambda_.1} parent=71 // pred_fallthru
        _
    $region72: #{_lambda_.1} parent=5 // pred_fallthru
      _
  $region6: #{_lambda_.1} parent=0 // loop_footer
    %s24 = sadd.s32 1, %s20
  $region7: #{_lambda_.1} parent=0 // loop_footer_branch
    %19 = sbr.rel target = $region3
  $region8: #{_lambda_.1} parent=0 // loop_exit
    _

</llo_original>
